<compile_context>
chip_gen: v6e
topology: v6e:2x2x1
jax: 0.10.0
libtpu: 0.0.40
codegen_flags: <defaults>
</compile_context>

<pallas_src>
import functools

import jax
import jax.numpy as jnp
from jax.experimental import pallas as pl
from jax.experimental.pallas import tpu as pltpu


def _gelu_openai(x):
    # 0.5 * x * (1 + tanh(0.7978845608028654 * x * (1 + 0.044715 * x * x)))
    return 0.5 * x * (1.0 + jnp.tanh(0.7978845608028654 * x * (1.0 + 0.044715 * x * x)))


def _round_up(x, m):
    return (x + m - 1) // m * m


# ----------------------------------------------------------------------------
# Kernel body
# ----------------------------------------------------------------------------
def _gpt2_mlp_kernel(x_ref, w1_ref, b1_ref, w2_ref, b2_ref, o_ref, *scratch,
                     n_sub, tsub, acc_in_out):
    """Grid = (token tiles i, 4H chunks j); j is the reduction ("arbitrary") axis.

    x_ref : (tm, H)    token tile (compute dtype)
    w1_ref: (H, tn)    dense_h_to_4h weight chunk ([in, out] layout)
    b1_ref: (1, tn)    f32 bias chunk
    w2_ref: (tn, H)    dense_4h_to_h weight chunk
    b2_ref: (1, H)     f32 bias
    o_ref : (tm, H)    output tile (resident across j: constant block index)
    scratch: optional (tm, H) f32 accumulator (only when the output is not f32)
    """
    j = pl.program_id(1)
    acc_ref = o_ref if acc_in_out else scratch[0]
    x = x_ref[...]

    # Statically-unrolled sub-chunks of the 4H axis: GEMM2 of sub-chunk s can
    # overlap the gelu/cast of sub-chunk s+1 on the VPU/EUP, and the live f32
    # intermediate is only (tm, tsub).
    for s in range(n_sub):
        off = s * tsub  # static offset, multiple of tsub (lane aligned)
        inter = jnp.dot(x, w1_ref[:, pl.ds(off, tsub)],
                        preferred_element_type=jnp.float32)
        inter = _gelu_openai(inter + b1_ref[:, pl.ds(off, tsub)].astype(jnp.float32))
        partial = jnp.dot(inter.astype(w2_ref.dtype), w2_ref[pl.ds(off, tsub), :],
                          preferred_element_type=jnp.float32)
        if s == 0:
            # First contribution of this grid step: assign on j == 0 (skips the
            # zero-init elementwise pass), accumulate otherwise.
            @pl.when(j == 0)
            def _(p=partial):
                acc_ref[...] = p.astype(acc_ref.dtype)

            @pl.when(j != 0)
            def _(p=partial):
                acc_ref[...] += p.astype(acc_ref.dtype)
        else:
            acc_ref[...] += partial.astype(acc_ref.dtype)

    @pl.when(j == pl.num_programs(1) - 1)
    def _finalize():
        out = acc_ref[...].astype(jnp.float32) + b2_ref[...].astype(jnp.float32)
        # Dropout is identity in eval/inference mode.
        # TODO(synk): training-mode dropout (mask + 1/(1-p) scale) would go here.
        o_ref[...] = out.astype(o_ref.dtype)


# ----------------------------------------------------------------------------
# Generation-aware sizing helpers
# ----------------------------------------------------------------------------
def _vmem_capacity_bytes():
    try:
        return int(pltpu.get_tpu_info().vmem_capacity_bytes)
    except Exception:  # off-TPU tracing / older API: assume 128 MiB parts
        return 128 << 20


def _weight_resident_budget(vmem_cap):
    """VMEM allowed for the (single-buffered, resident) weight slabs."""
    if vmem_cap >= (96 << 20):                      # v5e / v6e: 128 MiB per TC
        return 88 << 20
    return min(34 << 20, int(vmem_cap * 0.55))      # v7x-like: 64 MiB per TC


def _pick_tn(H, H4, w_itemsize, resident_budget):
    """Width of the 4H chunk per grid step.

    Full residency (tn = 4H, constant weight index_map, no re-streaming) when
    both weight slabs fit the budget; otherwise the largest 128-multiple
    divisor of 4H whose double-buffered chunks fit, preferring multiples of 256
    (v6e/v7x have 256-wide MXUs)."""
    if H4 % 128 != 0 or 2 * H * H4 * w_itemsize <= resident_budget:
        return H4
    # K-tiled chunks are double-buffered by the pipeline -> factor 2.
    target = resident_budget // max(1, 2 * 2 * H * w_itemsize)
    divisors = [t for t in range(128, H4, 128) if H4 % t == 0]
    if not divisors:
        return H4
    fitting = [t for t in divisors if t <= target]
    for pool in ([t for t in fitting if t % 256 == 0], fitting):
        if pool:
            return max(pool)
    return min(divisors)  # nothing fits the budget: smallest legal chunk


def _pick_tsub(tn, max_unroll=8):
    """In-body sub-chunk of the 4H chunk (statically unrolled)."""
    if tn % 128 != 0:
        return tn
    divs = [d for d in range(128, tn + 1, 128)
            if tn % d == 0 and tn // d <= max_unroll]
    if not divs:
        return tn
    for pool in ([d for d in divs if d % 256 == 0],
                 [d for d in divs if d >= 256],
                 divs):
        if pool:
            return min(pool)
    return tn


def _vmem_limit_bytes(tm, tn, tsub, H, x_dtype, w_dtype, out_dtype, vmem_cap,
                      single_buffered_weights):
    xi = jnp.dtype(x_dtype).itemsize
    wi = jnp.dtype(w_dtype).itemsize
    oi = jnp.dtype(out_dtype).itemsize
    wbufs = 1 if single_buffered_weights else 2
    est = (2 * tm * H * xi              # double-buffered x tiles
           + 2 * tm * H * oi            # double-buffered output tiles
           + wbufs * 2 * H * tn * wi    # w1 + w2 chunks
           + wbufs * (tn + H) * 4       # f32 bias chunks
           + tm * H * 4                 # f32 accumulator (scratch or resident out)
           + 2 * tm * tsub * 4          # f32 intermediate + gelu temporaries
           + tm * tsub * wi             # cast copy of the intermediate (GEMM2 lhs)
           + (6 << 20))                 # pipeline / compiler headroom
    ceiling = min(vmem_cap - (6 << 20), 100 << 20)
    return int(min(max(est, 32 << 20), ceiling))


@functools.lru_cache(maxsize=None)
def _supports_buffered_blockspec():
    try:
        pl.BlockSpec((8, 128), lambda i: (0, 0), pipeline_mode=pl.Buffered(1))
        return True
    except (AttributeError, TypeError):
        return False


_FALLBACK_ERRORS = (TypeError, ValueError, NotImplementedError) + (
    (pltpu.LoweringException,) if hasattr(pltpu, "LoweringException") else ())


# ----------------------------------------------------------------------------
# pallas_call construction
# ----------------------------------------------------------------------------
def _mlp_pallas_call(T_pad, H, H4, tm, tn, tsub, x_dtype, out_dtype, w_dtype,
                     acc_in_out, single_buffer_weights, vmem_limit_bytes):
    grid = (T_pad // tm, H4 // tn)
    resident = (tn == H4)  # constant index_map -> weight chunks stay in VMEM

    def _weight_spec(shape, index_map, constant):
        if single_buffer_weights and constant:
            # Constant block index: no need for double buffering.
            return pl.BlockSpec(shape, index_map, pipeline_mode=pl.Buffered(1))
        return pl.BlockSpec(shape, index_map)

    in_specs = [
        pl.BlockSpec((tm, H), lambda i, j: (i, 0)),                 # x tile
        _weight_spec((H, tn), lambda i, j: (0, j), resident),       # w1 chunk
        _weight_spec((1, tn), lambda i, j: (0, j), resident),       # b1 chunk
        _weight_spec((tn, H), lambda i, j: (j, 0), resident),       # w2 chunk
        _weight_spec((1, H), lambda i, j: (0, 0), True),            # b2
    ]
    out_specs = pl.BlockSpec((tm, H), lambda i, j: (i, 0))
    scratch_shapes = [] if acc_in_out else [pltpu.VMEM((tm, H), jnp.float32)]

    kernel = functools.partial(_gpt2_mlp_kernel, n_sub=tn // tsub, tsub=tsub,
                               acc_in_out=acc_in_out)

    flops = 4 * T_pad * H * H4                     # two GEMMs, 2 flops / MAC
    bytes_accessed = (T_pad * H * (jnp.dtype(x_dtype).itemsize
                                   + jnp.dtype(out_dtype).itemsize)
                      + 2 * H * H4 * jnp.dtype(w_dtype).itemsize
                      + (H4 + H) * 4)

    return pl.pallas_call(
        kernel,
        out_shape=jax.ShapeDtypeStruct((T_pad, H), out_dtype),
        grid_spec=pltpu.PrefetchScalarGridSpec(
            num_scalar_prefetch=0,
            grid=grid,
            in_specs=in_specs,
            out_specs=out_specs,
            scratch_shapes=scratch_shapes,
        ),
        compiler_params=pltpu.CompilerParams(
            dimension_semantics=("parallel", "arbitrary"),
            vmem_limit_bytes=vmem_limit_bytes,
        ),
        cost_estimate=pl.CostEstimate(
            flops=int(flops),
            transcendentals=int(T_pad * H4),
            bytes_accessed=int(bytes_accessed),
        ),
    )


# ----------------------------------------------------------------------------
# Public wrapper
# ----------------------------------------------------------------------------
def gpt2_mlp(hidden_states, w1, b1, w2, b2, *, tm=None, tn=None, tsub=None,
             compute_dtype=jnp.bfloat16):
    """GPT2MLP forward (eval-mode dropout = identity).

    hidden_states: [B, S, H]; w1: [H, 4H] (dense_h_to_4h.weight.T); b1: [4H];
    w2: [4H, H] (dense_4h_to_h.weight.T); b2: [H].

    compute_dtype: dtype fed to the MXU (default bf16 - the MXU is a bf16
    engine on v5e/v6e/v7x).  Accumulation is always f32, biases are added in
    f32, and the output keeps hidden_states' dtype.  For best performance pass
    w1/w2 already in compute_dtype so no per-call cast is materialized.
    """
    B, S, H = hidden_states.shape
    H4 = w1.shape[1]
    out_dtype = hidden_states.dtype

    x = hidden_states
    if compute_dtype is not None and x.dtype != compute_dtype:
        x = x.astype(compute_dtype)
    if compute_dtype is not None and w1.dtype != compute_dtype:
        w1 = w1.astype(compute_dtype)
    if compute_dtype is not None and w2.dtype != compute_dtype:
        w2 = w2.astype(compute_dtype)
    w_dtype = w1.dtype
    b1_2d = b1.reshape(1, H4).astype(jnp.float32)
    b2_2d = b2.reshape(1, H).astype(jnp.float32)

    T = B * S
    x = x.reshape(T, H)

    vmem_cap = _vmem_capacity_bytes()
    if tn is None:
        tn = _pick_tn(H, H4, jnp.dtype(w_dtype).itemsize,
                      _weight_resident_budget(vmem_cap))
    assert H4 % tn == 0, "tn must divide 4*hidden_size"
    resident = (tn == H4)
    if tsub is None:
        tsub = _pick_tsub(tn)
    assert tn % tsub == 0, "tsub must divide tn"

    # Token tile: bigger when K-tiled (weight re-streaming scales as T_pad/tm);
    # multiple of 16 sublanes (valid for f32 and bf16 packing).
    if tm is None:
        tm = 256 if resident else 512
    tm = max(16, (int(tm) // 16) * 16)
    tm = min(tm, _round_up(T, 16))
    if vmem_cap < (96 << 20) and T >= 32:
        # 64 MiB-per-TC parts (v7x-like) have 2 TensorCores: keep >=2 tiles on
        # the "parallel" token axis so both cores get work.
        tm = min(tm, max(16, _round_up(-(-T // 2), 16)))
    T_pad = _round_up(T, tm)
    if T_pad != T:
        x = jnp.pad(x, ((0, T_pad - T), (0, 0)))

    # f32 outputs accumulate directly in the resident output block (no scratch).
    acc_in_out = jnp.dtype(out_dtype) == jnp.dtype(jnp.float32)
    args = (x, w1, b1_2d, w2, b2_2d)

    def _build(single_buffer):
        vmem_limit = _vmem_limit_bytes(
            tm, tn, tsub, H, x.dtype, w_dtype, out_dtype, vmem_cap,
            single_buffered_weights=(single_buffer and resident))
        return _mlp_pallas_call(T_pad, H, H4, tm, tn, tsub, x.dtype, out_dtype,
                                w_dtype, acc_in_out,
                                single_buffer_weights=single_buffer,
                                vmem_limit_bytes=vmem_limit)

    if _supports_buffered_blockspec():
        try:
            out = _build(True)(*args)
        except _FALLBACK_ERRORS:
            # Pallas versions that accept pipeline_mode but reject Buffered(1)
            # at lowering; functionally identical, default double buffering.
            out = _build(False)(*args)
    else:
        out = _build(False)(*args)

    return out[:T].reshape(B, S, H)


def reference_mlp(hidden_states, w1, b1, w2, b2):
    inter = jnp.einsum("bsh,hf->bsf", hidden_states.astype(jnp.float32),
                       w1.astype(jnp.float32)) + b1
    inter = _gelu_openai(inter)
    return jnp.einsum("bsf,fh->bsh", inter, w2.astype(jnp.float32)) + b2


if __name__ == "__main__":
    def make_inputs(key, B, S, H):
        H4 = 4 * H
        kx, k1, k2, k3, k4 = jax.random.split(key, 5)
        hs = jax.random.normal(kx, (B, S, H), dtype=jnp.float32)
        w1 = 0.02 * jax.random.normal(k1, (H, H4), dtype=jnp.float32)   # dense_h_to_4h.weight.T
        b1 = 0.02 * jax.random.normal(k3, (H4,), dtype=jnp.float32)
        w2 = 0.02 * jax.random.normal(k2, (H4, H), dtype=jnp.float32)   # dense_4h_to_h.weight.T
        b2 = 0.02 * jax.random.normal(k4, (H,), dtype=jnp.float32)
        return hs, w1, b1, w2, b2

    # 1) Default bf16 compute, bf16 weights passed in (no per-call cast),
    #    f32 I/O, resident weights, direct output-block accumulation.
    hs, w1, b1, w2, b2 = make_inputs(jax.random.PRNGKey(0), 2, 8, 32)
    w1_bf, w2_bf = w1.astype(jnp.bfloat16), w2.astype(jnp.bfloat16)
    out = jax.block_until_ready(gpt2_mlp(hs, w1_bf, b1, w2_bf, b2))
    ref_bf = reference_mlp(hs.astype(jnp.bfloat16).astype(jnp.float32),
                           w1_bf.astype(jnp.float32), b1,
                           w2_bf.astype(jnp.float32), b2)
    assert out.shape == hs.shape
    assert jnp.allclose(out, ref_bf, atol=2e-2, rtol=2e-2), "bf16 default mismatch"

    # 2) f32 compute, 4H axis K-tiled into two chunks -> exercises accumulation
    #    across the reduction grid axis directly into the f32 output block.
    hs2, w12, b12, w22, b22 = make_inputs(jax.random.PRNGKey(1), 2, 8, 64)
    out2 = jax.block_until_ready(
        gpt2_mlp(hs2, w12, b12, w22, b22, tn=128, compute_dtype=jnp.float32))
    ref2 = reference_mlp(hs2, w12, b12, w22, b22)
    assert jnp.allclose(out2, ref2, atol=1e-4, rtol=1e-4), "f32 K-tiled mismatch"

    # 3) f32 compute, resident weights with in-body sub-chunking (tsub=128 on
    #    a 256-wide 4H axis) -> exercises the unrolled sub-chunk loop.
    out3 = jax.block_until_ready(
        gpt2_mlp(hs2, w12, b12, w22, b22, tsub=128, compute_dtype=jnp.float32))
    assert jnp.allclose(out3, ref2, atol=1e-4, rtol=1e-4), "f32 sub-chunk mismatch"

    # 4) bf16 I/O (bf16 output) -> f32 accumulator scratch path.
    hs_bf = hs.astype(jnp.bfloat16)
    out4 = jax.block_until_ready(gpt2_mlp(hs_bf, w1_bf, b1, w2_bf, b2))
    assert out4.dtype == jnp.bfloat16
    assert jnp.allclose(out4.astype(jnp.float32), ref_bf, atol=3e-2, rtol=3e-2), \
        "bf16 I/O mismatch"

    print("KERNEL_OK")
</pallas_src>

<mosaic_0001>
module attributes {stable_mosaic.version = 11 : i64} {
  func.func @_gpt2_mlp_kernel(%arg0: i32, %arg1: i32, %arg2: memref<16x32xbf16, #tpu.memory_space<vmem>>, %arg3: memref<32x128xbf16, #tpu.memory_space<vmem>>, %arg4: memref<1x128xf32, #tpu.memory_space<vmem>>, %arg5: memref<128x32xbf16, #tpu.memory_space<vmem>>, %arg6: memref<1x32xf32, #tpu.memory_space<vmem>>, %arg7: memref<16x32xf32, #tpu.memory_space<vmem>>) attributes {dimension_semantics = [#tpu.dimension_semantics<parallel>, #tpu.dimension_semantics<arbitrary>], iteration_bounds = array<i64: 1, 1>, scalar_prefetch = 0 : i64, scratch_operands = 0 : i64, tpu.core_type = #tpu.core_type<tc>, window_params = [{transform_indices = @transform_0, window_bounds = array<i64: 16, 32>}, {pipeline_mode = #tpu.pipeline_mode<synchronous>, transform_indices = @transform_1, window_bounds = array<i64: 32, 128>}, {pipeline_mode = #tpu.pipeline_mode<synchronous>, transform_indices = @transform_2, window_bounds = array<i64: 1, 128>}, {pipeline_mode = #tpu.pipeline_mode<synchronous>, transform_indices = @transform_3, window_bounds = array<i64: 128, 32>}, {pipeline_mode = #tpu.pipeline_mode<synchronous>, transform_indices = @transform_4, window_bounds = array<i64: 1, 32>}, {transform_indices = @transform_5, window_bounds = array<i64: 16, 32>}]} {
    %c0 = arith.constant 0 : index
    %c0_0 = arith.constant 0 : index
    %0 = vector.load %arg2[%c0, %c0_0] : memref<16x32xbf16, #tpu.memory_space<vmem>>, vector<16x32xbf16>
    %c0_1 = arith.constant 0 : index
    %c0_2 = arith.constant 0 : index
    %1 = vector.load %arg3[%c0_1, %c0_2] : memref<32x128xbf16, #tpu.memory_space<vmem>>, vector<32x128xbf16>
    %cst = arith.constant dense<0.000000e+00> : vector<16x128xf32>
    %2 = tpu.matmul %0, %1, %cst {dimension_numbers = #tpu.dot_dimension_numbers<[1], [0], [0], [1], [0, 0, 1, 1], [], []>} : vector<16x32xbf16>, vector<32x128xbf16>, vector<16x128xf32> -> vector<16x128xf32>
    %c0_3 = arith.constant 0 : index
    %c0_4 = arith.constant 0 : index
    %3 = vector.load %arg4[%c0_3, %c0_4] : memref<1x128xf32, #tpu.memory_space<vmem>>, vector<1x128xf32>
    %4 = vector.broadcast %3 : vector<1x128xf32> to vector<16x128xf32>
    %5 = arith.addf %2, %4 : vector<16x128xf32>
    %cst_5 = arith.constant 5.000000e-01 : f32
    %6 = vector.broadcast %cst_5 : f32 to vector<16x128xf32>
    %7 = arith.mulf %6, %5 : vector<16x128xf32>
    %cst_6 = arith.constant 0.797884583 : f32
    %8 = vector.broadcast %cst_6 : f32 to vector<16x128xf32>
    %9 = arith.mulf %8, %5 : vector<16x128xf32>
    %cst_7 = arith.constant 4.471500e-02 : f32
    %10 = vector.broadcast %cst_7 : f32 to vector<16x128xf32>
    %11 = arith.mulf %10, %5 : vector<16x128xf32>
    %12 = arith.mulf %11, %5 : vector<16x128xf32>
    %cst_8 = arith.constant 1.000000e+00 : f32
    %13 = vector.broadcast %cst_8 : f32 to vector<16x128xf32>
    %14 = arith.addf %13, %12 : vector<16x128xf32>
    %15 = arith.mulf %9, %14 : vector<16x128xf32>
    %16 = math.tanh %15 : vector<16x128xf32>
    %cst_9 = arith.constant 1.000000e+00 : f32
    %17 = vector.broadcast %cst_9 : f32 to vector<16x128xf32>
    %18 = arith.addf %17, %16 : vector<16x128xf32>
    %19 = arith.mulf %7, %18 : vector<16x128xf32>
    %20 = arith.truncf %19 : vector<16x128xf32> to vector<16x128xbf16>
    %c0_10 = arith.constant 0 : index
    %c0_11 = arith.constant 0 : index
    %21 = vector.load %arg5[%c0_10, %c0_11] : memref<128x32xbf16, #tpu.memory_space<vmem>>, vector<128x32xbf16>
    %cst_12 = arith.constant dense<0.000000e+00> : vector<16x32xf32>
    %22 = tpu.matmul %20, %21, %cst_12 {dimension_numbers = #tpu.dot_dimension_numbers<[1], [0], [0], [1], [0, 0, 1, 1], [], []>} : vector<16x128xbf16>, vector<128x32xbf16>, vector<16x32xf32> -> vector<16x32xf32>
    %c0_i32 = arith.constant 0 : i32
    %23 = arith.cmpi eq, %arg1, %c0_i32 : i32
    %24 = arith.extui %23 : i1 to i32
    %c0_i32_13 = arith.constant 0 : i32
    %25 = arith.cmpi ne, %24, %c0_i32_13 : i32
    scf.if %25 {
      %c0_18 = arith.constant 0 : index
      %c0_19 = arith.constant 0 : index
      %32 = vector.load %arg7[%c0_18, %c0_19] : memref<16x32xf32, #tpu.memory_space<vmem>>, vector<16x32xf32>
      tpu.vector_store %arg7[%c0_18, %c0_19], %22 {strides = array<i32>} : memref<16x32xf32, #tpu.memory_space<vmem>>, vector<16x32xf32>,
    } else {
    }
    %c0_i32_14 = arith.constant 0 : i32
    %26 = arith.cmpi ne, %arg1, %c0_i32_14 : i32
    %27 = arith.extui %26 : i1 to i32
    %c0_i32_15 = arith.constant 0 : i32
    %28 = arith.cmpi ne, %27, %c0_i32_15 : i32
    scf.if %28 {
      %c0_18 = arith.constant 0 : index
      %c0_19 = arith.constant 0 : index
      %32 = vector.load %arg7[%c0_18, %c0_19] : memref<16x32xf32, #tpu.memory_space<vmem>>, vector<16x32xf32>
      %33 = arith.addf %32, %22 : vector<16x32xf32>
      %c0_20 = arith.constant 0 : index
      %c0_21 = arith.constant 0 : index
      %34 = vector.load %arg7[%c0_20, %c0_21] : memref<16x32xf32, #tpu.memory_space<vmem>>, vector<16x32xf32>
      tpu.vector_store %arg7[%c0_20, %c0_21], %33 {strides = array<i32>} : memref<16x32xf32, #tpu.memory_space<vmem>>, vector<16x32xf32>,
    } else {
    }
    %c0_i32_16 = arith.constant 0 : i32
    %29 = arith.cmpi eq, %arg1, %c0_i32_16 : i32
    %30 = arith.extui %29 : i1 to i32
    %c0_i32_17 = arith.constant 0 : i32
    %31 = arith.cmpi ne, %30, %c0_i32_17 : i32
    scf.if %31 {
      %c0_18 = arith.constant 0 : index
      %c0_19 = arith.constant 0 : index
      %32 = vector.load %arg7[%c0_18, %c0_19] : memref<16x32xf32, #tpu.memory_space<vmem>>, vector<16x32xf32>
      %c0_20 = arith.constant 0 : index
      %c0_21 = arith.constant 0 : index
      %33 = vector.load %arg6[%c0_20, %c0_21] : memref<1x32xf32, #tpu.memory_space<vmem>>, vector<1x32xf32>
      %34 = vector.broadcast %33 : vector<1x32xf32> to vector<16x32xf32>
      %35 = arith.addf %32, %34 : vector<16x32xf32>
      %c0_22 = arith.constant 0 : index
      %c0_23 = arith.constant 0 : index
      %36 = vector.load %arg7[%c0_22, %c0_23] : memref<16x32xf32, #tpu.memory_space<vmem>>, vector<16x32xf32>
      tpu.vector_store %arg7[%c0_22, %c0_23], %35 {strides = array<i32>} : memref<16x32xf32, #tpu.memory_space<vmem>>, vector<16x32xf32>,
    } else {
    }
    return
  }
  func.func @transform_0(%arg0: i32, %arg1: i32) -> (i32, i32) {
    %c0_i32 = arith.constant 0 : i32
    %c0_i32_0 = arith.constant 0 : i32
    return %arg0, %c0_i32 : i32, i32
  }
  func.func @transform_1(%arg0: i32, %arg1: i32) -> (i32, i32) {
    %c0_i32 = arith.constant 0 : i32
    %c0_i32_0 = arith.constant 0 : i32
    return %c0_i32, %arg1 : i32, i32
  }
  func.func @transform_2(%arg0: i32, %arg1: i32) -> (i32, i32) {
    %c0_i32 = arith.constant 0 : i32
    %c0_i32_0 = arith.constant 0 : i32
    return %c0_i32, %arg1 : i32, i32
  }
  func.func @transform_3(%arg0: i32, %arg1: i32) -> (i32, i32) {
    %c0_i32 = arith.constant 0 : i32
    %c0_i32_0 = arith.constant 0 : i32
    return %arg1, %c0_i32 : i32, i32
  }
  func.func @transform_4(%arg0: i32, %arg1: i32) -> (i32, i32) {
    %c0_i32 = arith.constant 0 : i32
    %c0_i32_0 = arith.constant 0 : i32
    %c0_i32_1 = arith.constant 0 : i32
    return %c0_i32, %c0_i32_0 : i32, i32
  }
  func.func @transform_5(%arg0: i32, %arg1: i32) -> (i32, i32) {
    %c0_i32 = arith.constant 0 : i32
    %c0_i32_0 = arith.constant 0 : i32
    return %arg0, %c0_i32 : i32, i32
  }
}

</mosaic_0001>

<llo_original>
// kernel: tpu_custom_call.1
$region0: #{tpu_custom_call.1}
  #allocation0 [shape = 'u32[]', space=smem, size = 0x4, offset = 0x4, fixed_abs, tag = 'smem constant byte address 0x4 - core index']
  #allocation1 [shape = 'u32[144,128]{1,0:T(1,128)}', space=vmem, size = 0x12000, scoped, tag = 'internal scratch']
  %s0 = inlined_call_operand.vmem [shape: bf16[16,32], index: 0, kind: input, shape index: {}]
  %s1 = inlined_call_operand.vmem [shape: bf16[32,128], index: 1, kind: input, shape index: {}]
  %s2 = inlined_call_operand.vmem [shape: f32[1,128], index: 2, kind: input, shape index: {}]
  %s3 = inlined_call_operand.vmem [shape: bf16[128,32], index: 3, kind: input, shape index: {}]
  %s4 = inlined_call_operand.vmem [shape: f32[1,32], index: 4, kind: input, shape index: {}]
  %s5 = inlined_call_operand.hbm [shape: f32[16,32], index: 5, kind: output, shape index: {}]
  %s6 = sld [smem:[#allocation0]]
  $region42: #{tpu_custom_call.1} parent=0
    _
  %s8 = ssub.s32 1, %s6
  %s9 = scalar_select 0, %s8, %s6
  $region1: #{tpu_custom_call.1} parent=0
    #allocation2 [shape = 'u8[8192]{0}', space=vmem, size = 0x2000, scoped, tag = 'output window, operand 0, single buffered']
    #allocation3 [shape = 's32[1]{0}', space=sflag, size = 0x4, scoped, tag = 'scoped memory for tpu_custom_call.1']
    %10 = vsyncpa [#allocation3], 0
    // Predicated region
    $region2: #{tpu_custom_call.1} parent=1 // pred_check
      _
    $region3: #{tpu_custom_call.1} parent=1 // pred_check_branch
      %12 = sbr.rel (0) target = $region5
    $region4: #{tpu_custom_call.1} parent=1 // pred_region
      _
    $region5: #{tpu_custom_call.1} parent=1 // pred_fallthru
      _
    // Predicated region
    $region6: #{tpu_custom_call.1} parent=1 // pred_check
      _
    $region7: #{tpu_custom_call.1} parent=1 // pred_check_branch
      %14 = sbr.rel (0) target = $region9
    $region8: #{tpu_custom_call.1} parent=1 // pred_region
      _
    $region9: #{tpu_custom_call.1} parent=1 // pred_fallthru
      _
    // Predicated region
    $region10: #{tpu_custom_call.1} parent=1 // pred_check
      _
    $region11: #{tpu_custom_call.1} parent=1 // pred_check_branch
      %16 = sbr.rel (0) target = $region13
    $region12: #{tpu_custom_call.1} parent=1 // pred_region
      _
    $region13: #{tpu_custom_call.1} parent=1 // pred_fallthru
      _
    // Predicated region
    $region14: #{tpu_custom_call.1} parent=1 // pred_check
      _
    $region15: #{tpu_custom_call.1} parent=1 // pred_check_branch
      %18 = sbr.rel (0) target = $region17
    $region16: #{tpu_custom_call.1} parent=1 // pred_region
      _
    $region17: #{tpu_custom_call.1} parent=1 // pred_fallthru
      _
    // Predicated region
    $region18: #{tpu_custom_call.1} parent=1 // pred_check
      _
    $region19: #{tpu_custom_call.1} parent=1 // pred_check_branch
      %20 = sbr.rel (0) target = $region21
    $region20: #{tpu_custom_call.1} parent=1 // pred_region
      _
    $region21: #{tpu_custom_call.1} parent=1 // pred_fallthru
      _
    %v22 = vld [vmem:[%s0] sm:$0xf]
    %v23 = vld [vmem:[%s0 + $0x4] sm:$0xf]
    %v24 = vld [vmem:[%s1] sm:$0xf]
    %v25 = vld [vmem:[%s1 + $0x4] sm:$0xf]
    %v26 = vld [vmem:[%s1 + $0x8] sm:$0xf]
    %v27 = vld [vmem:[%s1 + $0xc] sm:$0xf]
    %v28 = vld [vmem:[%s2] sm:$0x1]
    %v30 = vlaneseq
    %v31 = vshrl.u32 %v30, 7
    %v32 = vsub.s32 0, %v31
    %v33 = vrot.slane %v28, %v32
    %v37 = vunpack.c.l.b16 %v22
    %v38 = vunpack.c.l.b16 %v23
    %v39 = vpack.c.b16 %v38, %v37
    %v44 = vunpack.c.l.b16 %v24
    %v45 = vunpack.c.l.b16 %v25
    %v46 = vunpack.c.l.b16 %v26
    %v47 = vunpack.c.l.b16 %v27
    %v48 = vpack.c.b16 %v45, %v44
    %v49 = vpack.c.b16 %v47, %v46
    %vm52 = vcmask 261120
    %v54 = vsel %vm52, %v39, 0
    %56 = vmatprep.subr.bf16.mxu0 0
    %57 = vmatpush1.bf16.msra.mxu0 0
    %58 = vmatprep.subr.bf16.mxu0 0
    %59 = vmatpush1.bf16.msra.mxu0 0
    %60 = vmatprep.subr.bf16.mxu0 0
    %61 = vmatpush1.bf16.msra.mxu0 0
    %62 = vmatprep.subr.bf16.mxu0 0
    %63 = vmatpush1.bf16.msra.mxu0 0
    %64 = vmatprep.subr.bf16.mxu0 0
    %65 = vmatpush1.bf16.msra.mxu0 0
    %66 = vmatprep.subr.bf16.mxu0 0
    %67 = vmatpush1.bf16.msra.mxu0 0
    %68 = vmatprep.subr.bf16.mxu0 0
    %69 = vmatpush1.bf16.msra.mxu0 %v49
    %70 = vmatprep.subr.bf16.mxu0 0
    %71 = vmatpush1.bf16.msra.mxu0 %v48
    %72 = vmatprep.subr.bf16.mxu0 0
    %73 = vmatpush2.bf16.msra.mxu0 0
    %74 = vmatprep.subr.bf16.mxu0 0
    %75 = vmatpush2.bf16.msra.mxu0 0
    %76 = vmatprep.subr.bf16.mxu0 0
    %77 = vmatpush2.bf16.msra.mxu0 0
    %78 = vmatprep.subr.bf16.mxu0 0
    %79 = vmatpush2.bf16.msra.mxu0 0
    %80 = vmatprep.subr.bf16.mxu0 0
    %81 = vmatpush2.bf16.msra.mxu0 0
    %82 = vmatprep.subr.bf16.mxu0 0
    %83 = vmatpush2.bf16.msra.mxu0 0
    %84 = vmatprep.subr.bf16.mxu0 0
    %85 = vmatpush2.bf16.msra.mxu0 0
    %86 = vmatprep.subr.bf16.mxu0 0
    %87 = vmatpush2.bf16.msra.mxu0 0
    %88 = vmatprep.mubr.bf16.mxu0 0
    %89 = vmatmul.mubr.bf16.gmra.mxu0 %v54
    %v90 = vpop.f32.mrf.mxu0
    %v91 = vadd.f32 %v33, %v90
    %v92 = vpop.f32.mrf.mxu0
    %v93 = vpop.f32.mrf.mxu0
    %v94 = vadd.f32 %v33, %v93
    %v95 = vpop.f32.mrf.mxu0
    %96 = vdwg.mxu0
    %v97 = vmul.f32 %v91, 0.5
    %v98 = vmul.f32 %v94, 0.5
    %v99 = vmul.f32 %v91, 0.7978846
    %v100 = vmul.f32 %v94, 0.7978846
    %v101 = vmul.f32 %v91, 0.044715
    %v102 = vmul.f32 %v94, 0.044715
    %v103 = vmul.f32 %v101, %v91
    %v104 = vmul.f32 %v102, %v94
    %v105 = vadd.f32 %v103, 1.0
    %v106 = vadd.f32 %v104, 1.0
    %v107 = vmul.f32 %v99, %v105
    %v108 = vmul.f32 %v100, %v106
    %v109 = vtanh.pop %v107
    %v110 = vtanh.pop %v108
    %v111 = vadd.f32 %v109, 1.0
    %v112 = vadd.f32 %v110, 1.0
    %v113 = vmul.f32 %v97, %v111
    %v114 = vmul.f32 %v98, %v112
    %v115 = vpack.c.bf16 %v114, %v113
    %v116 = vld [vmem:[%s3] sm:$0xf]
    %v117 = vld [vmem:[%s3 + $0x4] sm:$0xf]
    %v118 = vld [vmem:[%s3 + $0x8] sm:$0xf]
    %v119 = vld [vmem:[%s3 + $0xc] sm:$0xf]
    %v120 = vld [vmem:[%s3 + $0x10] sm:$0xf]
    %v121 = vld [vmem:[%s3 + $0x14] sm:$0xf]
    %v122 = vld [vmem:[%s3 + $0x18] sm:$0xf]
    %v123 = vld [vmem:[%s3 + $0x1c] sm:$0xf]
    %v124 = vld [vmem:[%s3 + $0x20] sm:$0xf]
    %v125 = vld [vmem:[%s3 + $0x24] sm:$0xf]
    %v126 = vld [vmem:[%s3 + $0x28] sm:$0xf]
    %v127 = vld [vmem:[%s3 + $0x2c] sm:$0xf]
    %v128 = vld [vmem:[%s3 + $0x30] sm:$0xf]
    %v129 = vld [vmem:[%s3 + $0x34] sm:$0xf]
    %v130 = vld [vmem:[%s3 + $0x38] sm:$0xf]
    %v131 = vld [vmem:[%s3 + $0x3c] sm:$0xf]
    %v148 = vunpack.c.l.b16 %v116
    %v149 = vunpack.c.l.b16 %v117
    %v150 = vunpack.c.l.b16 %v118
    %v151 = vunpack.c.l.b16 %v119
    %v152 = vunpack.c.l.b16 %v120
    %v153 = vunpack.c.l.b16 %v121
    %v154 = vunpack.c.l.b16 %v122
    %v155 = vunpack.c.l.b16 %v123
    %v156 = vunpack.c.l.b16 %v124
    %v157 = vunpack.c.l.b16 %v125
    %v158 = vunpack.c.l.b16 %v126
    %v159 = vunpack.c.l.b16 %v127
    %v160 = vunpack.c.l.b16 %v128
    %v161 = vunpack.c.l.b16 %v129
    %v162 = vunpack.c.l.b16 %v130
    %v163 = vunpack.c.l.b16 %v131
    %v164 = vpack.c.b16 %v149, %v148
    %v165 = vpack.c.b16 %v151, %v150
    %v166 = vpack.c.b16 %v153, %v152
    %v167 = vpack.c.b16 %v155, %v154
    %v168 = vpack.c.b16 %v157, %v156
    %v169 = vpack.c.b16 %v159, %v158
    %v170 = vpack.c.b16 %v161, %v160
    %v171 = vpack.c.b16 %v163, %v162
    %180 = vmatprep.subr.bf16.mxu0 0
    %181 = vmatpush1.bf16.msra.mxu0 %v171
    %182 = vmatprep.subr.bf16.mxu0 0
    %183 = vmatpush1.bf16.msra.mxu0 %v170
    %184 = vmatprep.subr.bf16.mxu0 0
    %185 = vmatpush1.bf16.msra.mxu0 %v169
    %186 = vmatprep.subr.bf16.mxu0 0
    %187 = vmatpush1.bf16.msra.mxu0 %v168
    %188 = vmatprep.subr.bf16.mxu0 0
    %189 = vmatpush1.bf16.msra.mxu0 %v167
    %190 = vmatprep.subr.bf16.mxu0 0
    %191 = vmatpush1.bf16.msra.mxu0 %v166
    %192 = vmatprep.subr.bf16.mxu0 0
    %193 = vmatpush1.bf16.msra.mxu0 %v165
    %194 = vmatprep.subr.bf16.mxu0 0
    %195 = vmatpush1.bf16.msra.mxu0 %v164
    %196 = vmatprep.subr.bf16.mxu0 0
    %197 = vmatpush2.bf16.msra.mxu0 0
    %198 = vmatprep.subr.bf16.mxu0 0
    %199 = vmatpush2.bf16.msra.mxu0 0
    %200 = vmatprep.subr.bf16.mxu0 0
    %201 = vmatpush2.bf16.msra.mxu0 0
    %202 = vmatprep.subr.bf16.mxu0 0
    %203 = vmatpush2.bf16.msra.mxu0 0
    %204 = vmatprep.subr.bf16.mxu0 0
    %205 = vmatpush2.bf16.msra.mxu0 0
    %206 = vmatprep.subr.bf16.mxu0 0
    %207 = vmatpush2.bf16.msra.mxu0 0
    %208 = vmatprep.subr.bf16.mxu0 0
    %209 = vmatpush2.bf16.msra.mxu0 0
    %210 = vmatprep.subr.bf16.mxu0 0
    %211 = vmatpush2.bf16.msra.mxu0 0
    %212 = vmatprep.mubr.bf16.mxu0 0
    %213 = vmatmul.mubr.bf16.gmra.mxu0 %v115
    %v214 = vpop.f32.mrf.mxu0
    %v215 = vadd.f32 0.0, %v214
    %v216 = vpop.f32.mrf.mxu0
    %v217 = vpop.f32.mrf.mxu0
    %v218 = vadd.f32 0.0, %v217
    %v219 = vpop.f32.mrf.mxu0
    %220 = vdwg.mxu0
    %p221 = scmp.eq.s32.totalorder 0, 0
    // Predicated region
    $region22: #{tpu_custom_call.1} parent=1 // pred_check
      %p222 = pneg %p221
    $region23: #{tpu_custom_call.1} parent=1 // pred_check_branch
      %224 = sbr.rel (%p222) target = $region25
    $region24: #{tpu_custom_call.1} parent=1 // pred_region
      %225 = vst.msk [vmem:[#allocation2] sm:$0xff] %vm52, %v215
      %226 = vst.msk [vmem:[#allocation2 + $0x8] sm:$0xff] %vm52, %v218
    $region25: #{tpu_custom_call.1} parent=1 // pred_fallthru
      _
    %p227 = scmp.ne.s32.totalorder 0, 0
    // Predicated region
    $region26: #{tpu_custom_call.1} parent=1 // pred_check
      %p228 = pneg %p227
    $region27: #{tpu_custom_call.1} parent=1 // pred_check_branch
      %230 = sbr.rel (%p228) target = $region29
    $region28: #{tpu_custom_call.1} parent=1 // pred_region
      %v231 = vld [vmem:[#allocation2] sm:$0xff]
      %v232 = vld [vmem:[#allocation2 + $0x8] sm:$0xff]
      %v233 = vadd.f32 %v231, %v215
      %v234 = vadd.f32 %v232, %v218
      %235 = vst.msk [vmem:[#allocation2] sm:$0xff] %vm52, %v233
      %236 = vst.msk [vmem:[#allocation2 + $0x8] sm:$0xff] %vm52, %v234
    $region29: #{tpu_custom_call.1} parent=1 // pred_fallthru
      _
    // Predicated region
    $region30: #{tpu_custom_call.1} parent=1 // pred_check
      %p237 = pneg %p221
    $region31: #{tpu_custom_call.1} parent=1 // pred_check_branch
      %239 = sbr.rel (%p237) target = $region33
    $region32: #{tpu_custom_call.1} parent=1 // pred_region
      %v240 = vld [vmem:[#allocation2] sm:$0xff]
      %v241 = vld [vmem:[#allocation2 + $0x8] sm:$0xff]
      %v242 = vld [vmem:[%s4] sm:$0x1]
      %v244 = vlaneseq
      %v245 = vshrl.u32 %v244, 7
      %v246 = vsub.s32 0, %v245
      %v247 = vrot.slane %v242, %v246
      %v249 = vadd.f32 %v240, %v247
      %v250 = vadd.f32 %v241, %v247
      %251 = vst.msk [vmem:[#allocation2] sm:$0xff] %vm52, %v249
      %252 = vst.msk [vmem:[#allocation2 + $0x8] sm:$0xff] %vm52, %v250
    $region33: #{tpu_custom_call.1} parent=1 // pred_fallthru
      _
    // Predicated region
    $region34: #{tpu_custom_call.1} parent=1 // pred_check
      _
    $region35: #{tpu_custom_call.1} parent=1 // pred_check_branch
      %254 = sbr.rel (0) target = $region37
    $region36: #{tpu_custom_call.1} parent=1 // pred_region
      %s256 = ssub.s32 256, 256
      %257 = vsyncadd [#allocation3], %s256
      %s258 = sshll.u32 [#allocation2], 4
      %s259 = int_to_ptr.vmem [resolvable:$true] %s258
      %264 = dma.vmem_to_hbm [thread:$0]  %s259, 256, %s5, [#allocation3], 128, 128, 8
    $region37: #{tpu_custom_call.1} parent=1 // pred_fallthru
      _
    // Predicated region
    $region38: #{tpu_custom_call.1} parent=1 // pred_check
      _
    $region39: #{tpu_custom_call.1} parent=1 // pred_check_branch
      %266 = sbr.rel (0) target = $region41
    $region40: #{tpu_custom_call.1} parent=1 // pred_region
      %267 = dma.done [#allocation3], 256
    $region41: #{tpu_custom_call.1} parent=1 // pred_fallthru
      _
    %268 = vsyncpa [#allocation3], 1

</llo_original>
